<compile_context>
chip_gen: v7x
topology: tpu7x:2x2x1
jax: 0.10.0
libtpu: 0.0.40
codegen_flags: <defaults>
</compile_context>

<pallas_src>
from functools import partial

import jax
import jax.numpy as jnp
from jax.experimental import pallas as pl
from jax.experimental.pallas import tpu as pltpu

LATENT_DIM = 2
IN_DIM = 200
IN_PAD = 256          # lane-dense padding of the 200-wide input/output
MULV_DIM = 2 * LATENT_DIM


def _vae_kernel(x_ref,
                w1_ref, b1_ref, w2_ref, b2_ref,
                wmulv_ref, bmulv_ref,
                wd1_ref, bd1_ref, wd2_ref, bd2_ref, wd3_ref, bd3_ref,
                out_ref):
    f32 = jnp.float32
    bf16 = jnp.bfloat16

    x = x_ref[...]                                     # (TB, 256) bf16; cols 200:202 carry eps
    eps = x_ref[:, IN_DIM:IN_DIM + LATENT_DIM].astype(f32)   # (TB, 2)

    # ---- encoder: Linear(256->128)+ReLU, Linear(128->64)+ReLU (bf16 MXU, f32 acc) ----
    # NOTE: w1 pad rows 200:256 are exactly zero, so the eps/pad lanes of x
    # contribute nothing to this matmul.
    h = jnp.dot(x, w1_ref[...], preferred_element_type=f32) + b1_ref[...]
    h = jnp.maximum(h, 0.0)
    h = jnp.dot(h.astype(bf16), w2_ref[...], preferred_element_type=f32) + b2_ref[...]
    h = jnp.maximum(h, 0.0)

    # ---- fused latent heads: one small MXU matmul producing [mu | logvar] (TB, 4) ----
    mulv = jnp.dot(h.astype(bf16), wmulv_ref[...],
                   preferred_element_type=f32) + bmulv_ref[...]
    mu = mulv[:, :LATENT_DIM]
    logvar = mulv[:, LATENT_DIM:]

    # ---- reparameterise: z = mu + eps * exp(0.5 * logvar)  (f32 VPU/EUP) ----
    z = mu + eps * jnp.exp(0.5 * logvar)

    # ---- decoder layer 1 (K = latent = 2): VPU broadcast FMAs, no MXU push ----
    d = bd1_ref[...]                                   # (1, 64) f32
    for j in range(LATENT_DIM):                        # static unroll (2 iters)
        d = d + z[:, j:j + 1] * wd1_ref[j:j + 1, :]
    d = jnp.maximum(d, 0.0)

    # ---- decoder: Linear(64->128)+ReLU, Linear(128->256) (bf16 MXU, f32 acc) ----
    d = jnp.dot(d.astype(bf16), wd2_ref[...], preferred_element_type=f32) + bd2_ref[...]
    d = jnp.maximum(d, 0.0)
    logits = jnp.dot(d.astype(bf16), wd3_ref[...],
                     preferred_element_type=f32) + bd3_ref[...]

    # ---- single lane-dense (TB, 256) output: cols 0:200 = x_recon, 200:204 = [mu|logvar] ----
    out_ref[...] = jax.nn.sigmoid(logits)
    out_ref[:, IN_DIM:IN_DIM + MULV_DIM] = mulv        # small VMEM overwrite; one HBM stream


def pack_params(params):
    """One-time weight packing (run OFF the hot path): pad to lane-dense widths,
    cast matmul operands to bf16, fuse the mu/logvar heads into one matrix."""
    bf16 = jnp.bfloat16
    return {
        # NOTE: w1 pad rows 200:256 MUST stay zero (eps rides in x columns 200:202).
        "w1": jnp.pad(params["w1"], ((0, IN_PAD - IN_DIM), (0, 0))).astype(bf16),
        "b1": params["b1"],
        "w2": params["w2"].astype(bf16),
        "b2": params["b2"],
        "wmulv": jnp.concatenate([params["wmu"], params["wlv"]], axis=1).astype(bf16),
        "bmulv": jnp.concatenate([params["bmu"], params["blv"]], axis=1),
        "wd1": params["wd1"],                           # f32 (stays on VPU path)
        "bd1": params["bd1"],
        "wd2": params["wd2"].astype(bf16),
        "bd2": params["bd2"],
        "wd3": jnp.pad(params["wd3"], ((0, 0), (0, IN_PAD - IN_DIM))).astype(bf16),
        "bd3": jnp.pad(params["bd3"], ((0, 0), (0, IN_PAD - IN_DIM))),
    }


def _pick_tile(batch, tb, align=16):
    """Batch tile: multiple of 16 (bf16 sublane tile), as large as tb, but with
    >=2 grid steps whenever possible so v7x can shard the batch over both TCs."""
    ba = max(align, ((batch + align - 1) // align) * align)
    tile = max(align, (min(tb, ba) // align) * align)
    if ba > align and ba // tile < 2:
        tile = max(align, ((ba // 2) // align) * align)
    padded = ((ba + tile - 1) // tile) * tile
    return tile, padded


@partial(jax.jit, static_argnames=("tb",))
def vae_forward(x, eps, packed, *, tb=512):
    """x: (B, 200) f32, eps: (B, latent) f32, packed: output of pack_params.

    Returns (x_recon (B,200), mu (B,latent), log_var (B,latent)).
    """
    B = x.shape[0]
    TB, Bp = _pick_tile(B, tb)
    n_steps = Bp // TB

    # Pack eps into the pad lanes of x and cast the whole streamed input to bf16
    # (fused here under jit) -> a single (Bp, 256) bf16 input stream.
    xp = jnp.concatenate([x, eps], axis=1).astype(jnp.bfloat16)          # (B, 202)
    xp = jnp.pad(xp, ((0, Bp - B), (0, IN_PAD - IN_DIM - LATENT_DIM)))   # (Bp, 256)

    def _w(shape):
        # Constant index_map -> the block is DMA'd once and stays VMEM-resident
        # across all batch steps (total resident weights ~100 KB, so the extra
        # pipeline buffer costs negligible VMEM headroom).
        return pl.BlockSpec(shape, lambda i: (0, 0))

    in_specs = [
        pl.BlockSpec((TB, IN_PAD), lambda i: (i, 0)),            # x (+eps in pad lanes)
        _w((IN_PAD, 128)), _w((1, 128)),                         # w1, b1
        _w((128, 64)), _w((1, 64)),                              # w2, b2
        _w((64, MULV_DIM)), _w((1, MULV_DIM)),                   # wmulv, bmulv
        _w((LATENT_DIM, 64)), _w((1, 64)),                       # wd1, bd1
        _w((64, 128)), _w((1, 128)),                             # wd2, bd2
        _w((128, IN_PAD)), _w((1, IN_PAD)),                      # wd3, bd3
    ]
    out_specs = pl.BlockSpec((TB, IN_PAD), lambda i: (i, 0))
    out_shape = jax.ShapeDtypeStruct((Bp, IN_PAD), jnp.float32)

    cparams = dict(dimension_semantics=("parallel",))            # v7x: both TCs
    if TB >= 1024:
        # Large tiles exceed v5e's 16 MiB scoped-VMEM default; 32 MiB is safe on
        # v5e/v6e and equals v7x's scoped default (64 MiB physical per TC there).
        cparams["vmem_limit_bytes"] = 32 * 1024 * 1024

    out = pl.pallas_call(
        _vae_kernel,
        out_shape=out_shape,
        grid=(n_steps,),
        in_specs=in_specs,
        out_specs=out_specs,
        compiler_params=pltpu.CompilerParams(**cparams),
    )(xp,
      packed["w1"], packed["b1"], packed["w2"], packed["b2"],
      packed["wmulv"], packed["bmulv"],
      packed["wd1"], packed["bd1"], packed["wd2"], packed["bd2"],
      packed["wd3"], packed["bd3"])

    x_recon = out[:B, :IN_DIM]
    mu = out[:B, IN_DIM:IN_DIM + LATENT_DIM]
    logvar = out[:B, IN_DIM + LATENT_DIM:IN_DIM + MULV_DIM]
    return x_recon, mu, logvar


def init_params(key):
    """Deterministic synthetic init (PyTorch-Linear-style uniform +-1/sqrt(fan_in)).
    Weights stored as (in, out); biases as (1, out); all f32 (packed once by pack_params)."""
    dims = {
        "w1": (200, 128), "w2": (128, 64),
        "wmu": (64, LATENT_DIM), "wlv": (64, LATENT_DIM),
        "wd1": (LATENT_DIM, 64), "wd2": (64, 128), "wd3": (128, 200),
    }
    params = {}
    keys = jax.random.split(key, 2 * len(dims))
    for i, (name, (fan_in, fan_out)) in enumerate(dims.items()):
        bound = 1.0 / jnp.sqrt(jnp.float32(fan_in))
        params[name] = jax.random.uniform(
            keys[2 * i], (fan_in, fan_out), jnp.float32, -bound, bound)
        params["b" + name[1:]] = jax.random.uniform(
            keys[2 * i + 1], (1, fan_out), jnp.float32, -bound, bound)
    return params


def reference_forward(x, eps, p):
    """Pure-JAX f32 reference (kernel uses bf16 matmul operands / bf16-streamed
    x+eps -> loose tolerance)."""
    h = jnp.maximum(x @ p["w1"] + p["b1"], 0.0)
    h = jnp.maximum(h @ p["w2"] + p["b2"], 0.0)
    mu = h @ p["wmu"] + p["bmu"]
    logvar = h @ p["wlv"] + p["blv"]
    z = mu + eps * jnp.exp(0.5 * logvar)
    d = jnp.maximum(z @ p["wd1"] + p["bd1"], 0.0)
    d = jnp.maximum(d @ p["wd2"] + p["bd2"], 0.0)
    return jax.nn.sigmoid(d @ p["wd3"] + p["bd3"]), mu, logvar


if __name__ == "__main__":
    key = jax.random.PRNGKey(0)
    k_params, k_x, k_eps = jax.random.split(key, 3)

    # Small, non-multiple-of-16 batch: exercises batch padding AND a 2-step grid.
    B = 20
    params = init_params(k_params)
    packed = pack_params(params)          # one-time packing, off the hot path
    x = jax.random.normal(k_x, (B, IN_DIM), jnp.float32)
    # torch.randn_like(std): the stochastic draw is generated here (deterministically)
    # and passed into the kernel so the math matches the module's semantics.
    eps = jax.random.normal(k_eps, (B, LATENT_DIM), jnp.float32)

    x_recon, mu, logvar = vae_forward(x, eps, packed)
    jax.block_until_ready((x_recon, mu, logvar))

    # correctness check against pure-JAX f32 reference (bf16 matmuls / bf16 x-stream)
    xr_ref, mu_ref, lv_ref = reference_forward(x, eps, params)
    assert x_recon.shape == (B, IN_DIM)
    assert mu.shape == (B, LATENT_DIM) and logvar.shape == (B, LATENT_DIM)
    assert jnp.allclose(mu, mu_ref, atol=3e-2, rtol=3e-2)
    assert jnp.allclose(logvar, lv_ref, atol=3e-2, rtol=3e-2)
    assert jnp.allclose(x_recon, xr_ref, atol=3e-2, rtol=3e-2)

    print("KERNEL_OK")
</pallas_src>

<mosaic_0001>
module attributes {stable_mosaic.version = 11 : i64} {
  func.func @_vae_kernel(%arg0: i32, %arg1: memref<16x256xbf16, #tpu.memory_space<vmem>>, %arg2: memref<256x128xbf16, #tpu.memory_space<vmem>>, %arg3: memref<1x128xf32, #tpu.memory_space<vmem>>, %arg4: memref<128x64xbf16, #tpu.memory_space<vmem>>, %arg5: memref<1x64xf32, #tpu.memory_space<vmem>>, %arg6: memref<64x4xbf16, #tpu.memory_space<vmem>>, %arg7: memref<1x4xf32, #tpu.memory_space<vmem>>, %arg8: memref<2x64xf32, #tpu.memory_space<vmem>>, %arg9: memref<1x64xf32, #tpu.memory_space<vmem>>, %arg10: memref<64x128xbf16, #tpu.memory_space<vmem>>, %arg11: memref<1x128xf32, #tpu.memory_space<vmem>>, %arg12: memref<128x256xbf16, #tpu.memory_space<vmem>>, %arg13: memref<1x256xf32, #tpu.memory_space<vmem>>, %arg14: memref<16x256xf32, #tpu.memory_space<vmem>>) attributes {dimension_semantics = [#tpu.dimension_semantics<parallel>], iteration_bounds = array<i64: 2>, scalar_prefetch = 0 : i64, scratch_operands = 0 : i64, tpu.core_type = #tpu.core_type<tc>, window_params = [{transform_indices = @transform_0, window_bounds = array<i64: 16, 256>}, {pipeline_mode = #tpu.pipeline_mode<synchronous>, transform_indices = @transform_1, window_bounds = array<i64: 256, 128>}, {pipeline_mode = #tpu.pipeline_mode<synchronous>, transform_indices = @transform_2, window_bounds = array<i64: 1, 128>}, {pipeline_mode = #tpu.pipeline_mode<synchronous>, transform_indices = @transform_3, window_bounds = array<i64: 128, 64>}, {pipeline_mode = #tpu.pipeline_mode<synchronous>, transform_indices = @transform_4, window_bounds = array<i64: 1, 64>}, {pipeline_mode = #tpu.pipeline_mode<synchronous>, transform_indices = @transform_5, window_bounds = array<i64: 64, 4>}, {pipeline_mode = #tpu.pipeline_mode<synchronous>, transform_indices = @transform_6, window_bounds = array<i64: 1, 4>}, {pipeline_mode = #tpu.pipeline_mode<synchronous>, transform_indices = @transform_7, window_bounds = array<i64: 2, 64>}, {pipeline_mode = #tpu.pipeline_mode<synchronous>, transform_indices = @transform_8, window_bounds = array<i64: 1, 64>}, {pipeline_mode = #tpu.pipeline_mode<synchronous>, transform_indices = @transform_9, window_bounds = array<i64: 64, 128>}, {pipeline_mode = #tpu.pipeline_mode<synchronous>, transform_indices = @transform_10, window_bounds = array<i64: 1, 128>}, {pipeline_mode = #tpu.pipeline_mode<synchronous>, transform_indices = @transform_11, window_bounds = array<i64: 128, 256>}, {pipeline_mode = #tpu.pipeline_mode<synchronous>, transform_indices = @transform_12, window_bounds = array<i64: 1, 256>}, {transform_indices = @transform_13, window_bounds = array<i64: 16, 256>}]} {
    %c0 = arith.constant 0 : index
    %c0_0 = arith.constant 0 : index
    %0 = vector.load %arg1[%c0, %c0_0] : memref<16x256xbf16, #tpu.memory_space<vmem>>, vector<16x256xbf16>
    %c0_1 = arith.constant 0 : index
    %c200 = arith.constant 200 : index
    %1 = vector.load %arg1[%c0_1, %c200] : memref<16x256xbf16, #tpu.memory_space<vmem>>, vector<16x2xbf16>
    %2 = arith.extf %1 : vector<16x2xbf16> to vector<16x2xf32>
    %c0_2 = arith.constant 0 : index
    %c0_3 = arith.constant 0 : index
    %3 = vector.load %arg2[%c0_2, %c0_3] : memref<256x128xbf16, #tpu.memory_space<vmem>>, vector<256x128xbf16>
    %cst = arith.constant dense<0.000000e+00> : vector<16x128xf32>
    %4 = tpu.matmul %0, %3, %cst {dimension_numbers = #tpu.dot_dimension_numbers<[1], [0], [0], [1], [0, 0, 1, 1], [], []>} : vector<16x256xbf16>, vector<256x128xbf16>, vector<16x128xf32> -> vector<16x128xf32>
    %c0_4 = arith.constant 0 : index
    %c0_5 = arith.constant 0 : index
    %5 = vector.load %arg3[%c0_4, %c0_5] : memref<1x128xf32, #tpu.memory_space<vmem>>, vector<1x128xf32>
    %6 = vector.broadcast %5 : vector<1x128xf32> to vector<16x128xf32>
    %7 = arith.addf %4, %6 : vector<16x128xf32>
    %cst_6 = arith.constant 0.000000e+00 : f32
    %8 = vector.broadcast %cst_6 : f32 to vector<16x128xf32>
    %9 = arith.maximumf %7, %8 : vector<16x128xf32>
    %10 = arith.truncf %9 : vector<16x128xf32> to vector<16x128xbf16>
    %c0_7 = arith.constant 0 : index
    %c0_8 = arith.constant 0 : index
    %11 = vector.load %arg4[%c0_7, %c0_8] : memref<128x64xbf16, #tpu.memory_space<vmem>>, vector<128x64xbf16>
    %cst_9 = arith.constant dense<0.000000e+00> : vector<16x64xf32>
    %12 = tpu.matmul %10, %11, %cst_9 {dimension_numbers = #tpu.dot_dimension_numbers<[1], [0], [0], [1], [0, 0, 1, 1], [], []>} : vector<16x128xbf16>, vector<128x64xbf16>, vector<16x64xf32> -> vector<16x64xf32>
    %c0_10 = arith.constant 0 : index
    %c0_11 = arith.constant 0 : index
    %13 = vector.load %arg5[%c0_10, %c0_11] : memref<1x64xf32, #tpu.memory_space<vmem>>, vector<1x64xf32>
    %14 = vector.broadcast %13 : vector<1x64xf32> to vector<16x64xf32>
    %15 = arith.addf %12, %14 : vector<16x64xf32>
    %cst_12 = arith.constant 0.000000e+00 : f32
    %16 = vector.broadcast %cst_12 : f32 to vector<16x64xf32>
    %17 = arith.maximumf %15, %16 : vector<16x64xf32>
    %18 = arith.truncf %17 : vector<16x64xf32> to vector<16x64xbf16>
    %c0_13 = arith.constant 0 : index
    %c0_14 = arith.constant 0 : index
    %19 = vector.load %arg6[%c0_13, %c0_14] : memref<64x4xbf16, #tpu.memory_space<vmem>>, vector<64x4xbf16>
    %cst_15 = arith.constant dense<0.000000e+00> : vector<16x4xf32>
    %20 = tpu.matmul %18, %19, %cst_15 {dimension_numbers = #tpu.dot_dimension_numbers<[1], [0], [0], [1], [0, 0, 1, 1], [], []>} : vector<16x64xbf16>, vector<64x4xbf16>, vector<16x4xf32> -> vector<16x4xf32>
    %c0_16 = arith.constant 0 : index
    %c0_17 = arith.constant 0 : index
    %21 = vector.load %arg7[%c0_16, %c0_17] : memref<1x4xf32, #tpu.memory_space<vmem>>, vector<1x4xf32>
    %22 = vector.broadcast %21 : vector<1x4xf32> to vector<16x4xf32>
    %23 = arith.addf %20, %22 : vector<16x4xf32>
    %24 = vector.extract_strided_slice %23 {offsets = [0, 0], sizes = [16, 2], strides = [1, 1]} : vector<16x4xf32> to vector<16x2xf32>
    %25 = vector.extract_strided_slice %23 {offsets = [0, 2], sizes = [16, 2], strides = [1, 1]} : vector<16x4xf32> to vector<16x2xf32>
    %cst_18 = arith.constant 5.000000e-01 : f32
    %26 = vector.broadcast %cst_18 : f32 to vector<16x2xf32>
    %27 = arith.mulf %26, %25 : vector<16x2xf32>
    %28 = math.exp %27 : vector<16x2xf32>
    %29 = arith.mulf %2, %28 : vector<16x2xf32>
    %30 = arith.addf %24, %29 : vector<16x2xf32>
    %c0_19 = arith.constant 0 : index
    %c0_20 = arith.constant 0 : index
    %31 = vector.load %arg9[%c0_19, %c0_20] : memref<1x64xf32, #tpu.memory_space<vmem>>, vector<1x64xf32>
    %32 = vector.extract_strided_slice %30 {offsets = [0, 0], sizes = [16, 1], strides = [1, 1]} : vector<16x2xf32> to vector<16x1xf32>
    %c0_21 = arith.constant 0 : index
    %c0_22 = arith.constant 0 : index
    %33 = vector.load %arg8[%c0_21, %c0_22] : memref<2x64xf32, #tpu.memory_space<vmem>>, vector<1x64xf32>
    %34 = vector.broadcast %32 : vector<16x1xf32> to vector<16x64xf32>
    %35 = vector.broadcast %33 : vector<1x64xf32> to vector<16x64xf32>
    %36 = arith.mulf %34, %35 : vector<16x64xf32>
    %37 = vector.broadcast %31 : vector<1x64xf32> to vector<16x64xf32>
    %38 = arith.addf %37, %36 : vector<16x64xf32>
    %39 = vector.extract_strided_slice %30 {offsets = [0, 1], sizes = [16, 1], strides = [1, 1]} : vector<16x2xf32> to vector<16x1xf32>
    %c1 = arith.constant 1 : index
    %c0_23 = arith.constant 0 : index
    %40 = vector.load %arg8[%c1, %c0_23] : memref<2x64xf32, #tpu.memory_space<vmem>>, vector<1x64xf32>
    %41 = vector.broadcast %39 : vector<16x1xf32> to vector<16x64xf32>
    %42 = vector.broadcast %40 : vector<1x64xf32> to vector<16x64xf32>
    %43 = arith.mulf %41, %42 : vector<16x64xf32>
    %44 = arith.addf %38, %43 : vector<16x64xf32>
    %cst_24 = arith.constant 0.000000e+00 : f32
    %45 = vector.broadcast %cst_24 : f32 to vector<16x64xf32>
    %46 = arith.maximumf %44, %45 : vector<16x64xf32>
    %47 = arith.truncf %46 : vector<16x64xf32> to vector<16x64xbf16>
    %c0_25 = arith.constant 0 : index
    %c0_26 = arith.constant 0 : index
    %48 = vector.load %arg10[%c0_25, %c0_26] : memref<64x128xbf16, #tpu.memory_space<vmem>>, vector<64x128xbf16>
    %cst_27 = arith.constant dense<0.000000e+00> : vector<16x128xf32>
    %49 = tpu.matmul %47, %48, %cst_27 {dimension_numbers = #tpu.dot_dimension_numbers<[1], [0], [0], [1], [0, 0, 1, 1], [], []>} : vector<16x64xbf16>, vector<64x128xbf16>, vector<16x128xf32> -> vector<16x128xf32>
    %c0_28 = arith.constant 0 : index
    %c0_29 = arith.constant 0 : index
    %50 = vector.load %arg11[%c0_28, %c0_29] : memref<1x128xf32, #tpu.memory_space<vmem>>, vector<1x128xf32>
    %51 = vector.broadcast %50 : vector<1x128xf32> to vector<16x128xf32>
    %52 = arith.addf %49, %51 : vector<16x128xf32>
    %cst_30 = arith.constant 0.000000e+00 : f32
    %53 = vector.broadcast %cst_30 : f32 to vector<16x128xf32>
    %54 = arith.maximumf %52, %53 : vector<16x128xf32>
    %55 = arith.truncf %54 : vector<16x128xf32> to vector<16x128xbf16>
    %c0_31 = arith.constant 0 : index
    %c0_32 = arith.constant 0 : index
    %56 = vector.load %arg12[%c0_31, %c0_32] : memref<128x256xbf16, #tpu.memory_space<vmem>>, vector<128x256xbf16>
    %cst_33 = arith.constant dense<0.000000e+00> : vector<16x256xf32>
    %57 = tpu.matmul %55, %56, %cst_33 {dimension_numbers = #tpu.dot_dimension_numbers<[1], [0], [0], [1], [0, 0, 1, 1], [], []>} : vector<16x128xbf16>, vector<128x256xbf16>, vector<16x256xf32> -> vector<16x256xf32>
    %c0_34 = arith.constant 0 : index
    %c0_35 = arith.constant 0 : index
    %58 = vector.load %arg13[%c0_34, %c0_35] : memref<1x256xf32, #tpu.memory_space<vmem>>, vector<1x256xf32>
    %59 = vector.broadcast %58 : vector<1x256xf32> to vector<16x256xf32>
    %60 = arith.addf %57, %59 : vector<16x256xf32>
    %61 = arith.negf %60 : vector<16x256xf32>
    %62 = math.exp %61 : vector<16x256xf32>
    %cst_36 = arith.constant 1.000000e+00 : f32
    %63 = vector.broadcast %cst_36 : f32 to vector<16x256xf32>
    %64 = arith.addf %63, %62 : vector<16x256xf32>
    %65 = arith.divf %63, %64 : vector<16x256xf32>
    %c0_37 = arith.constant 0 : index
    %c0_38 = arith.constant 0 : index
    %66 = vector.load %arg14[%c0_37, %c0_38] : memref<16x256xf32, #tpu.memory_space<vmem>>, vector<16x256xf32>
    tpu.vector_store %arg14[%c0_37, %c0_38], %65 {strides = array<i32>} : memref<16x256xf32, #tpu.memory_space<vmem>>, vector<16x256xf32>,
    %c0_39 = arith.constant 0 : index
    %c200_40 = arith.constant 200 : index
    %67 = vector.load %arg14[%c0_39, %c200_40] : memref<16x256xf32, #tpu.memory_space<vmem>>, vector<16x4xf32>
    tpu.vector_store %arg14[%c0_39, %c200_40], %23 {strides = array<i32>} : memref<16x256xf32, #tpu.memory_space<vmem>>, vector<16x4xf32>,
    return
  }
  func.func @transform_0(%arg0: i32) -> (i32, i32) {
    %c0_i32 = arith.constant 0 : i32
    %c0_i32_0 = arith.constant 0 : i32
    return %arg0, %c0_i32 : i32, i32
  }
  func.func @transform_1(%arg0: i32) -> (i32, i32) {
    %c0_i32 = arith.constant 0 : i32
    %c0_i32_0 = arith.constant 0 : i32
    %c0_i32_1 = arith.constant 0 : i32
    return %c0_i32, %c0_i32_0 : i32, i32
  }
  func.func @transform_2(%arg0: i32) -> (i32, i32) {
    %c0_i32 = arith.constant 0 : i32
    %c0_i32_0 = arith.constant 0 : i32
    %c0_i32_1 = arith.constant 0 : i32
    return %c0_i32, %c0_i32_0 : i32, i32
  }
  func.func @transform_3(%arg0: i32) -> (i32, i32) {
    %c0_i32 = arith.constant 0 : i32
    %c0_i32_0 = arith.constant 0 : i32
    %c0_i32_1 = arith.constant 0 : i32
    return %c0_i32, %c0_i32_0 : i32, i32
  }
  func.func @transform_4(%arg0: i32) -> (i32, i32) {
    %c0_i32 = arith.constant 0 : i32
    %c0_i32_0 = arith.constant 0 : i32
    %c0_i32_1 = arith.constant 0 : i32
    return %c0_i32, %c0_i32_0 : i32, i32
  }
  func.func @transform_5(%arg0: i32) -> (i32, i32) {
    %c0_i32 = arith.constant 0 : i32
    %c0_i32_0 = arith.constant 0 : i32
    %c0_i32_1 = arith.constant 0 : i32
    return %c0_i32, %c0_i32_0 : i32, i32
  }
  func.func @transform_6(%arg0: i32) -> (i32, i32) {
    %c0_i32 = arith.constant 0 : i32
    %c0_i32_0 = arith.constant 0 : i32
    %c0_i32_1 = arith.constant 0 : i32
    return %c0_i32, %c0_i32_0 : i32, i32
  }
  func.func @transform_7(%arg0: i32) -> (i32, i32) {
    %c0_i32 = arith.constant 0 : i32
    %c0_i32_0 = arith.constant 0 : i32
    %c0_i32_1 = arith.constant 0 : i32
    return %c0_i32, %c0_i32_0 : i32, i32
  }
  func.func @transform_8(%arg0: i32) -> (i32, i32) {
    %c0_i32 = arith.constant 0 : i32
    %c0_i32_0 = arith.constant 0 : i32
    %c0_i32_1 = arith.constant 0 : i32
    return %c0_i32, %c0_i32_0 : i32, i32
  }
  func.func @transform_9(%arg0: i32) -> (i32, i32) {
    %c0_i32 = arith.constant 0 : i32
    %c0_i32_0 = arith.constant 0 : i32
    %c0_i32_1 = arith.constant 0 : i32
    return %c0_i32, %c0_i32_0 : i32, i32
  }
  func.func @transform_10(%arg0: i32) -> (i32, i32) {
    %c0_i32 = arith.constant 0 : i32
    %c0_i32_0 = arith.constant 0 : i32
    %c0_i32_1 = arith.constant 0 : i32
    return %c0_i32, %c0_i32_0 : i32, i32
  }
  func.func @transform_11(%arg0: i32) -> (i32, i32) {
    %c0_i32 = arith.constant 0 : i32
    %c0_i32_0 = arith.constant 0 : i32
    %c0_i32_1 = arith.constant 0 : i32
    return %c0_i32, %c0_i32_0 : i32, i32
  }
  func.func @transform_12(%arg0: i32) -> (i32, i32) {
    %c0_i32 = arith.constant 0 : i32
    %c0_i32_0 = arith.constant 0 : i32
    %c0_i32_1 = arith.constant 0 : i32
    return %c0_i32, %c0_i32_0 : i32, i32
  }
  func.func @transform_13(%arg0: i32) -> (i32, i32) {
    %c0_i32 = arith.constant 0 : i32
    %c0_i32_0 = arith.constant 0 : i32
    return %arg0, %c0_i32 : i32, i32
  }
}

</mosaic_0001>

<llo_original>
// kernel: vae_forward.1
$region0: #{vae_forward.1}
  #allocation0 [shape = 'u32[]', space=smem, size = 0x4, offset = 0x4, fixed_abs, tag = 'smem constant byte address 0x4 - core index']
  #allocation1 [shape = 'u32[144,128]{1,0:T(1,128)}', space=vmem, size = 0x12000, scoped, tag = 'internal scratch']
  %s0 = inlined_call_operand.vmem [shape: bf16[32,256], index: 0, kind: input, shape index: {}]
  %s1 = inlined_call_operand.vmem [shape: bf16[256,128], index: 1, kind: input, shape index: {}]
  %s2 = inlined_call_operand.hbm [shape: f32[1,128], index: 2, kind: input, shape index: {}]
  %s3 = inlined_call_operand.vmem [shape: bf16[128,64], index: 3, kind: input, shape index: {}]
  %s4 = inlined_call_operand.hbm [shape: f32[1,64], index: 4, kind: input, shape index: {}]
  %s5 = inlined_call_operand.vmem [shape: bf16[64,4], index: 5, kind: input, shape index: {}]
  %s6 = inlined_call_operand.hbm [shape: f32[1,4], index: 6, kind: input, shape index: {}]
  %s7 = inlined_call_operand.vmem [shape: f32[2,64], index: 7, kind: input, shape index: {}]
  %s8 = inlined_call_operand.hbm [shape: f32[1,64], index: 8, kind: input, shape index: {}]
  %s9 = inlined_call_operand.vmem [shape: bf16[64,128], index: 9, kind: input, shape index: {}]
  %s10 = inlined_call_operand.hbm [shape: f32[1,128], index: 10, kind: input, shape index: {}]
  %s11 = inlined_call_operand.vmem [shape: bf16[128,256], index: 11, kind: input, shape index: {}]
  %s12 = inlined_call_operand.hbm [shape: f32[1,256], index: 12, kind: input, shape index: {}]
  %s13 = inlined_call_operand.vmem [shape: f32[32,256], index: 13, kind: output, shape index: {}]
  %s14 = sld [smem:[#allocation0]]
  $region109: #{vae_forward.1} parent=0
    _
  %s16 = ssub.s32 1, %s14
  %s17 = scalar_select 0, %s16, %s14
  $region1: #{vae_forward.1} parent=0
    #allocation2 [shape = 'u8[512]{0}', space=vmem, size = 0x400, scoped, tag = 'input window, operand 2, single buffered']
    #allocation3 [shape = 's32[2]{0}', space=sflag, size = 0x8, scoped, tag = 'scoped memory for vae_forward.1']
    #allocation4 [shape = 'u8[512]{0}', space=vmem, size = 0x400, scoped, tag = 'input window, operand 4, single buffered']
    #allocation5 [shape = 's32[1]{0}', space=sflag, size = 0x4, scoped, tag = 'scoped memory for vae_forward.1']
    #allocation6 [shape = 'u8[512]{0}', space=vmem, size = 0x400, scoped, tag = 'input window, operand 6, single buffered']
    #allocation7 [shape = 'u8[512]{0}', space=vmem, size = 0x400, scoped, tag = 'input window, operand 8, single buffered']
    #allocation8 [shape = 's32[1]{0}', space=sflag, size = 0x4, scoped, tag = 'scoped memory for vae_forward.1']
    #allocation9 [shape = 'u8[512]{0}', space=vmem, size = 0x400, scoped, tag = 'input window, operand 10, single buffered']
    #allocation10 [shape = 'u8[1024]{0}', space=vmem, size = 0x400, scoped, tag = 'input window, operand 12, single buffered']
    #allocation11 [shape = 's32[1]{0}', space=sflag, size = 0x4, scoped, tag = 'scoped memory for vae_forward.1']
    %18 = vsyncpa [#allocation3], 0
    %19 = vsyncpa [#allocation5], 0
    %20 = vsyncpa [#allocation8], 0
    %21 = vsyncpa [#allocation11], 0
    loop: start=0, step=1, limit=4
    $region2: #{vae_forward.1} parent=1 // loop_pre_header
      _
    $region3: #{vae_forward.1} parent=1 // loop_header
      %s23 = sphi 0, %s27
      %p24 = scmp.ge.s32.totalorder %s23, 4
      %s33 = sphi 0, %s35
      %s36 = sphi 0, %s33
      %s37 = sphi 0, %s36
      %s53 = sphi 0, %s37
      %s57 = sphi 0, %s57
      %s59 = sphi 0, %s57
      %s60 = sphi 0, %s59
      %s74 = sphi 0, %s60
      %s78 = sphi 0, %s78
      %s80 = sphi 0, %s78
      %s81 = sphi 0, %s80
      %s95 = sphi 0, %s81
      %s99 = sphi 0, %s99
      %s101 = sphi 0, %s99
      %s102 = sphi 0, %s101
      %s116 = sphi 0, %s102
      %s120 = sphi 0, %s120
      %s122 = sphi 0, %s120
      %s123 = sphi 0, %s122
      %s137 = sphi 0, %s123
      %s141 = sphi 0, %s141
      %s143 = sphi 0, %s141
      %s144 = sphi 0, %s143
      %s158 = sphi 0, %s144
      %s162 = sphi 0, %s162
      %s164 = sphi 0, %s162
      %s165 = sphi 0, %s164
      %s179 = sphi 0, %s165
      %s183 = sphi 0, %s183
      %s185 = sphi 0, %s183
      %s186 = sphi 0, %s185
      %s200 = sphi 0, %s186
      %s204 = sphi 0, %s204
      %s206 = sphi 0, %s204
      %s207 = sphi 0, %s206
      %s221 = sphi 0, %s207
      %s225 = sphi 0, %s225
      %s227 = sphi 0, %s225
      %s228 = sphi 0, %s227
      %s242 = sphi 0, %s228
      %s246 = sphi 0, %s246
      %s248 = sphi 0, %s246
      %s249 = sphi 0, %s248
      %s263 = sphi 0, %s249
      %s267 = sphi 0, %s267
      %s269 = sphi 0, %s267
      %s270 = sphi 0, %s269
      %s284 = sphi 0, %s270
      %s288 = sphi 0, %s288
      %s290 = sphi 0, %s288
      %s291 = sphi 0, %s290
      %s305 = sphi 0, %s291
      %s311 = sphi 0, %s313
      %s314 = sphi 0, %s311
      %s315 = sphi 0, %s314
      %s331 = sphi 0, %s315
    $region4: #{vae_forward.1} parent=1 // loop_header_branch
      %26 = sbr.rel (%p24) target = $region8
    $region5: #{vae_forward.1} parent=1 // loop_body
      %s28 = ssub.s32 %s23, 1
      %s29 = ssub.s32 %s23, 2
      %s30 = sadd.s32 %s23, 1
      %s31 = ssub.s32 %s23, %s30
      %p32 = scmp.eq.s32.totalorder %s31, 0
      %s34 = sadd.s32 %s33, 1
      %s35 = scalar_select %p32, %s33, %s34
      %p38 = pneg %p32
      %p39 = scmp.eq.s32.totalorder %s23, 1
      %p40 = por %p38, %p39
      %p41 = scmp.ne.s32.totalorder %s33, %s36
      %p42 = scmp.eq.s32.totalorder %s23, 0
      %p43 = por %p41, %p42
      %p44 = scmp.ne.s32.totalorder %s33, %s36
      %p45 = scmp.eq.s32.totalorder %s28, 1
      %p46 = por %p44, %p45
      %p47 = scmp.ne.s32.totalorder %s36, %s37
      %p48 = scmp.eq.s32.totalorder %s28, 0
      %p49 = por %p47, %p48
      %p50 = scmp.ne.s32.totalorder %s36, %s37
      %p51 = scmp.eq.s32.totalorder %s29, 1
      %p52 = por %p50, %p51
      %p54 = scmp.ne.s32.totalorder %s37, %s53
      %p55 = scmp.eq.s32.totalorder %s29, 0
      %p56 = por %p54, %p55
      %s58 = sadd.s32 %s57, 1
      %p61 = scmp.eq.s32.totalorder %s23, 1
      %p62 = scmp.ne.s32.totalorder %s57, %s59
      %p63 = scmp.eq.s32.totalorder %s23, 0
      %p64 = por %p62, %p63
      %p65 = scmp.ne.s32.totalorder %s57, %s59
      %p66 = scmp.eq.s32.totalorder %s28, 1
      %p67 = por %p65, %p66
      %p68 = scmp.ne.s32.totalorder %s59, %s60
      %p69 = scmp.eq.s32.totalorder %s28, 0
      %p70 = por %p68, %p69
      %p71 = scmp.ne.s32.totalorder %s59, %s60
      %p72 = scmp.eq.s32.totalorder %s29, 1
      %p73 = por %p71, %p72
      %p75 = scmp.ne.s32.totalorder %s60, %s74
      %p76 = scmp.eq.s32.totalorder %s29, 0
      %p77 = por %p75, %p76
      %s79 = sadd.s32 %s78, 1
      %p82 = scmp.eq.s32.totalorder %s23, 1
      %p83 = scmp.ne.s32.totalorder %s78, %s80
      %p84 = scmp.eq.s32.totalorder %s23, 0
      %p85 = por %p83, %p84
      %p86 = scmp.ne.s32.totalorder %s78, %s80
      %p87 = scmp.eq.s32.totalorder %s28, 1
      %p88 = por %p86, %p87
      %p89 = scmp.ne.s32.totalorder %s80, %s81
      %p90 = scmp.eq.s32.totalorder %s28, 0
      %p91 = por %p89, %p90
      %p92 = scmp.ne.s32.totalorder %s80, %s81
      %p93 = scmp.eq.s32.totalorder %s29, 1
      %p94 = por %p92, %p93
      %p96 = scmp.ne.s32.totalorder %s81, %s95
      %p97 = scmp.eq.s32.totalorder %s29, 0
      %p98 = por %p96, %p97
      %s100 = sadd.s32 %s99, 1
      %p103 = scmp.eq.s32.totalorder %s23, 1
      %p104 = scmp.ne.s32.totalorder %s99, %s101
      %p105 = scmp.eq.s32.totalorder %s23, 0
      %p106 = por %p104, %p105
      %p107 = scmp.ne.s32.totalorder %s99, %s101
      %p108 = scmp.eq.s32.totalorder %s28, 1
      %p109 = por %p107, %p108
      %p110 = scmp.ne.s32.totalorder %s101, %s102
      %p111 = scmp.eq.s32.totalorder %s28, 0
      %p112 = por %p110, %p111
      %p113 = scmp.ne.s32.totalorder %s101, %s102
      %p114 = scmp.eq.s32.totalorder %s29, 1
      %p115 = por %p113, %p114
      %p117 = scmp.ne.s32.totalorder %s102, %s116
      %p118 = scmp.eq.s32.totalorder %s29, 0
      %p119 = por %p117, %p118
      %s121 = sadd.s32 %s120, 1
      %p124 = scmp.eq.s32.totalorder %s23, 1
      %p125 = scmp.ne.s32.totalorder %s120, %s122
      %p126 = scmp.eq.s32.totalorder %s23, 0
      %p127 = por %p125, %p126
      %p128 = scmp.ne.s32.totalorder %s120, %s122
      %p129 = scmp.eq.s32.totalorder %s28, 1
      %p130 = por %p128, %p129
      %p131 = scmp.ne.s32.totalorder %s122, %s123
      %p132 = scmp.eq.s32.totalorder %s28, 0
      %p133 = por %p131, %p132
      %p134 = scmp.ne.s32.totalorder %s122, %s123
      %p135 = scmp.eq.s32.totalorder %s29, 1
      %p136 = por %p134, %p135
      %p138 = scmp.ne.s32.totalorder %s123, %s137
      %p139 = scmp.eq.s32.totalorder %s29, 0
      %p140 = por %p138, %p139
      %s142 = sadd.s32 %s141, 1
      %p145 = scmp.eq.s32.totalorder %s23, 1
      %p146 = scmp.ne.s32.totalorder %s141, %s143
      %p147 = scmp.eq.s32.totalorder %s23, 0
      %p148 = por %p146, %p147
      %p149 = scmp.ne.s32.totalorder %s141, %s143
      %p150 = scmp.eq.s32.totalorder %s28, 1
      %p151 = por %p149, %p150
      %p152 = scmp.ne.s32.totalorder %s143, %s144
      %p153 = scmp.eq.s32.totalorder %s28, 0
      %p154 = por %p152, %p153
      %p155 = scmp.ne.s32.totalorder %s143, %s144
      %p156 = scmp.eq.s32.totalorder %s29, 1
      %p157 = por %p155, %p156
      %p159 = scmp.ne.s32.totalorder %s144, %s158
      %p160 = scmp.eq.s32.totalorder %s29, 0
      %p161 = por %p159, %p160
      %s163 = sadd.s32 %s162, 1
      %p166 = scmp.eq.s32.totalorder %s23, 1
      %p167 = scmp.ne.s32.totalorder %s162, %s164
      %p168 = scmp.eq.s32.totalorder %s23, 0
      %p169 = por %p167, %p168
      %p170 = scmp.ne.s32.totalorder %s162, %s164
      %p171 = scmp.eq.s32.totalorder %s28, 1
      %p172 = por %p170, %p171
      %p173 = scmp.ne.s32.totalorder %s164, %s165
      %p174 = scmp.eq.s32.totalorder %s28, 0
      %p175 = por %p173, %p174
      %p176 = scmp.ne.s32.totalorder %s164, %s165
      %p177 = scmp.eq.s32.totalorder %s29, 1
      %p178 = por %p176, %p177
      %p180 = scmp.ne.s32.totalorder %s165, %s179
      %p181 = scmp.eq.s32.totalorder %s29, 0
      %p182 = por %p180, %p181
      %s184 = sadd.s32 %s183, 1
      %p187 = scmp.eq.s32.totalorder %s23, 1
      %p188 = scmp.ne.s32.totalorder %s183, %s185
      %p189 = scmp.eq.s32.totalorder %s23, 0
      %p190 = por %p188, %p189
      %p191 = scmp.ne.s32.totalorder %s183, %s185
      %p192 = scmp.eq.s32.totalorder %s28, 1
      %p193 = por %p191, %p192
      %p194 = scmp.ne.s32.totalorder %s185, %s186
      %p195 = scmp.eq.s32.totalorder %s28, 0
      %p196 = por %p194, %p195
      %p197 = scmp.ne.s32.totalorder %s185, %s186
      %p198 = scmp.eq.s32.totalorder %s29, 1
      %p199 = por %p197, %p198
      %p201 = scmp.ne.s32.totalorder %s186, %s200
      %p202 = scmp.eq.s32.totalorder %s29, 0
      %p203 = por %p201, %p202
      %s205 = sadd.s32 %s204, 1
      %p208 = scmp.eq.s32.totalorder %s23, 1
      %p209 = scmp.ne.s32.totalorder %s204, %s206
      %p210 = scmp.eq.s32.totalorder %s23, 0
      %p211 = por %p209, %p210
      %p212 = scmp.ne.s32.totalorder %s204, %s206
      %p213 = scmp.eq.s32.totalorder %s28, 1
      %p214 = por %p212, %p213
      %p215 = scmp.ne.s32.totalorder %s206, %s207
      %p216 = scmp.eq.s32.totalorder %s28, 0
      %p217 = por %p215, %p216
      %p218 = scmp.ne.s32.totalorder %s206, %s207
      %p219 = scmp.eq.s32.totalorder %s29, 1
      %p220 = por %p218, %p219
      %p222 = scmp.ne.s32.totalorder %s207, %s221
      %p223 = scmp.eq.s32.totalorder %s29, 0
      %p224 = por %p222, %p223
      %s226 = sadd.s32 %s225, 1
      %p229 = scmp.eq.s32.totalorder %s23, 1
      %p230 = scmp.ne.s32.totalorder %s225, %s227
      %p231 = scmp.eq.s32.totalorder %s23, 0
      %p232 = por %p230, %p231
      %p233 = scmp.ne.s32.totalorder %s225, %s227
      %p234 = scmp.eq.s32.totalorder %s28, 1
      %p235 = por %p233, %p234
      %p236 = scmp.ne.s32.totalorder %s227, %s228
      %p237 = scmp.eq.s32.totalorder %s28, 0
      %p238 = por %p236, %p237
      %p239 = scmp.ne.s32.totalorder %s227, %s228
      %p240 = scmp.eq.s32.totalorder %s29, 1
      %p241 = por %p239, %p240
      %p243 = scmp.ne.s32.totalorder %s228, %s242
      %p244 = scmp.eq.s32.totalorder %s29, 0
      %p245 = por %p243, %p244
      %s247 = sadd.s32 %s246, 1
      %p250 = scmp.eq.s32.totalorder %s23, 1
      %p251 = scmp.ne.s32.totalorder %s246, %s248
      %p252 = scmp.eq.s32.totalorder %s23, 0
      %p253 = por %p251, %p252
      %p254 = scmp.ne.s32.totalorder %s246, %s248
      %p255 = scmp.eq.s32.totalorder %s28, 1
      %p256 = por %p254, %p255
      %p257 = scmp.ne.s32.totalorder %s248, %s249
      %p258 = scmp.eq.s32.totalorder %s28, 0
      %p259 = por %p257, %p258
      %p260 = scmp.ne.s32.totalorder %s248, %s249
      %p261 = scmp.eq.s32.totalorder %s29, 1
      %p262 = por %p260, %p261
      %p264 = scmp.ne.s32.totalorder %s249, %s263
      %p265 = scmp.eq.s32.totalorder %s29, 0
      %p266 = por %p264, %p265
      %s268 = sadd.s32 %s267, 1
      %p271 = scmp.eq.s32.totalorder %s23, 1
      %p272 = scmp.ne.s32.totalorder %s267, %s269
      %p273 = scmp.eq.s32.totalorder %s23, 0
      %p274 = por %p272, %p273
      %p275 = scmp.ne.s32.totalorder %s267, %s269
      %p276 = scmp.eq.s32.totalorder %s28, 1
      %p277 = por %p275, %p276
      %p278 = scmp.ne.s32.totalorder %s269, %s270
      %p279 = scmp.eq.s32.totalorder %s28, 0
      %p280 = por %p278, %p279
      %p281 = scmp.ne.s32.totalorder %s269, %s270
      %p282 = scmp.eq.s32.totalorder %s29, 1
      %p283 = por %p281, %p282
      %p285 = scmp.ne.s32.totalorder %s270, %s284
      %p286 = scmp.eq.s32.totalorder %s29, 0
      %p287 = por %p285, %p286
      %s289 = sadd.s32 %s288, 1
      %p292 = scmp.eq.s32.totalorder %s23, 1
      %p293 = scmp.ne.s32.totalorder %s288, %s290
      %p294 = scmp.eq.s32.totalorder %s23, 0
      %p295 = por %p293, %p294
      %p296 = scmp.ne.s32.totalorder %s288, %s290
      %p297 = scmp.eq.s32.totalorder %s28, 1
      %p298 = por %p296, %p297
      %p299 = scmp.ne.s32.totalorder %s290, %s291
      %p300 = scmp.eq.s32.totalorder %s28, 0
      %p301 = por %p299, %p300
      %p302 = scmp.ne.s32.totalorder %s290, %s291
      %p303 = scmp.eq.s32.totalorder %s29, 1
      %p304 = por %p302, %p303
      %p306 = scmp.ne.s32.totalorder %s291, %s305
      %p307 = scmp.eq.s32.totalorder %s29, 0
      %p308 = por %p306, %p307
      %s309 = ssub.s32 %s23, %s30
      %p310 = scmp.eq.s32.totalorder %s309, 0
      %s312 = sadd.s32 %s311, 1
      %s313 = scalar_select %p310, %s311, %s312
      %p316 = pneg %p310
      %p317 = scmp.eq.s32.totalorder %s23, 1
      %p318 = por %p316, %p317
      %p319 = scmp.ne.s32.totalorder %s311, %s314
      %p320 = scmp.eq.s32.totalorder %s23, 0
      %p321 = por %p319, %p320
      %p322 = scmp.ne.s32.totalorder %s311, %s314
      %p323 = scmp.eq.s32.totalorder %s28, 1
      %p324 = por %p322, %p323
      %p325 = scmp.ne.s32.totalorder %s314, %s315
      %p326 = scmp.eq.s32.totalorder %s28, 0
      %p327 = por %p325, %p326
      %p328 = scmp.ne.s32.totalorder %s314, %s315
      %p329 = scmp.eq.s32.totalorder %s29, 1
      %p330 = por %p328, %p329
      %p332 = scmp.ne.s32.totalorder %s315, %s331
      %p333 = scmp.eq.s32.totalorder %s29, 0
      %p334 = por %p332, %p333
      %p335 = scmp.le.s32.totalorder 1, %s23
      %p336 = scmp.lt.s32.totalorder %s23, 3
      %p337 = pnand %p335, %p336
      %p338 = pneg %p337
      // Predicated region
      $region9: #{vae_forward.1} parent=5 // pred_check
        _
      $region10: #{vae_forward.1} parent=5 // pred_check_branch
        %340 = sbr.rel (%p337) target = $region12
      $region11: #{vae_forward.1} parent=5 // pred_region
        %s341 = ssub.s32 %s23, 1
        // Predicated region
        $region13: #{vae_forward.1} parent=11 // pred_check
          %p342 = pneg %p70
        $region14: #{vae_forward.1} parent=11 // pred_check_branch
          %344 = sbr.rel (%p342) target = $region16
        $region15: #{vae_forward.1} parent=11 // pred_region
          _
        $region16: #{vae_forward.1} parent=11 // pred_fallthru
          _
        // Predicated region
        $region17: #{vae_forward.1} parent=11 // pred_check
          %p345 = pneg %p91
        $region18: #{vae_forward.1} parent=11 // pred_check_branch
          %347 = sbr.rel (%p345) target = $region20
        $region19: #{vae_forward.1} parent=11 // pred_region
          %s349 = ssub.s32 16, 16
          %350 = vsyncadd [#allocation3], %s349
          %s352 = sshll.u32 [#allocation2], 4
          %s353 = int_to_ptr.vmem [resolvable:$true] %s352
          %355 = dma.hbm_to_vmem [thread:$0]  %s2, 16, %s353, [#allocation3]
        $region20: #{vae_forward.1} parent=11 // pred_fallthru
          _
        // Predicated region
        $region21: #{vae_forward.1} parent=11 // pred_check
          %p356 = pneg %p112
        $region22: #{vae_forward.1} parent=11 // pred_check_branch
          %358 = sbr.rel (%p356) target = $region24
        $region23: #{vae_forward.1} parent=11 // pred_region
          _
        $region24: #{vae_forward.1} parent=11 // pred_fallthru
          _
        // Predicated region
        $region25: #{vae_forward.1} parent=11 // pred_check
          %p359 = pneg %p133
        $region26: #{vae_forward.1} parent=11 // pred_check_branch
          %361 = sbr.rel (%p359) target = $region28
        $region27: #{vae_forward.1} parent=11 // pred_region
          %s363 = ssub.s32 16, 16
          %364 = vsyncadd [#allocation5], %s363
          %s366 = sshll.u32 [#allocation4], 4
          %s367 = int_to_ptr.vmem [resolvable:$true] %s366
          %369 = dma.hbm_to_vmem [thread:$0]  %s4, 16, %s367, [#allocation5]
        $region28: #{vae_forward.1} parent=11 // pred_fallthru
          _
        // Predicated region
        $region29: #{vae_forward.1} parent=11 // pred_check
          %p370 = pneg %p154
        $region30: #{vae_forward.1} parent=11 // pred_check_branch
          %372 = sbr.rel (%p370) target = $region32
        $region31: #{vae_forward.1} parent=11 // pred_region
          _
        $region32: #{vae_forward.1} parent=11 // pred_fallthru
          _
        // Predicated region
        $region33: #{vae_forward.1} parent=11 // pred_check
          %p373 = pneg %p175
        $region34: #{vae_forward.1} parent=11 // pred_check_branch
          %375 = sbr.rel (%p373) target = $region36
        $region35: #{vae_forward.1} parent=11 // pred_region
          %s377 = ssub.s32 16, 16
          %378 = vsyncadd [#allocation5], %s377
          %s380 = sshll.u32 [#allocation6], 4
          %s381 = int_to_ptr.vmem [resolvable:$true] %s380
          %383 = dma.hbm_to_vmem [thread:$0]  %s6, 16, %s381, [#allocation5]
        $region36: #{vae_forward.1} parent=11 // pred_fallthru
          _
        // Predicated region
        $region37: #{vae_forward.1} parent=11 // pred_check
          %p384 = pneg %p196
        $region38: #{vae_forward.1} parent=11 // pred_check_branch
          %386 = sbr.rel (%p384) target = $region40
        $region39: #{vae_forward.1} parent=11 // pred_region
          _
        $region40: #{vae_forward.1} parent=11 // pred_fallthru
          _
        // Predicated region
        $region41: #{vae_forward.1} parent=11 // pred_check
          %p387 = pneg %p217
        $region42: #{vae_forward.1} parent=11 // pred_check_branch
          %389 = sbr.rel (%p387) target = $region44
        $region43: #{vae_forward.1} parent=11 // pred_region
          %s391 = ssub.s32 16, 16
          %392 = vsyncadd [#allocation8], %s391
          %s394 = sshll.u32 [#allocation7], 4
          %s395 = int_to_ptr.vmem [resolvable:$true] %s394
          %397 = dma.hbm_to_vmem [thread:$0]  %s8, 16, %s395, [#allocation8]
        $region44: #{vae_forward.1} parent=11 // pred_fallthru
          _
        // Predicated region
        $region45: #{vae_forward.1} parent=11 // pred_check
          %p398 = pneg %p238
        $region46: #{vae_forward.1} parent=11 // pred_check_branch
          %400 = sbr.rel (%p398) target = $region48
        $region47: #{vae_forward.1} parent=11 // pred_region
          _
        $region48: #{vae_forward.1} parent=11 // pred_fallthru
          _
        // Predicated region
        $region49: #{vae_forward.1} parent=11 // pred_check
          %p401 = pneg %p259
        $region50: #{vae_forward.1} parent=11 // pred_check_branch
          %403 = sbr.rel (%p401) target = $region52
        $region51: #{vae_forward.1} parent=11 // pred_region
          %s405 = ssub.s32 16, 16
          %406 = vsyncadd [#allocation8], %s405
          %s408 = sshll.u32 [#allocation9], 4
          %s409 = int_to_ptr.vmem [resolvable:$true] %s408
          %411 = dma.hbm_to_vmem [thread:$0]  %s10, 16, %s409, [#allocation8]
        $region52: #{vae_forward.1} parent=11 // pred_fallthru
          _
        // Predicated region
        $region53: #{vae_forward.1} parent=11 // pred_check
          %p412 = pneg %p280
        $region54: #{vae_forward.1} parent=11 // pred_check_branch
          %414 = sbr.rel (%p412) target = $region56
        $region55: #{vae_forward.1} parent=11 // pred_region
          _
        $region56: #{vae_forward.1} parent=11 // pred_fallthru
          _
        // Predicated region
        $region57: #{vae_forward.1} parent=11 // pred_check
          %p415 = pneg %p301
        $region58: #{vae_forward.1} parent=11 // pred_check_branch
          %417 = sbr.rel (%p415) target = $region60
        $region59: #{vae_forward.1} parent=11 // pred_region
          %s419 = ssub.s32 32, 32
          %420 = vsyncadd [#allocation11], %s419
          %s422 = sshll.u32 [#allocation10], 4
          %s423 = int_to_ptr.vmem [resolvable:$true] %s422
          %425 = dma.hbm_to_vmem [thread:$0]  %s12, 32, %s423, [#allocation11]
        $region60: #{vae_forward.1} parent=11 // pred_fallthru
          _
      $region12: #{vae_forward.1} parent=5 // pred_fallthru
        _
      %p426 = scmp.lt.s32.totalorder %s23, 2
      // Predicated region
      $region61: #{vae_forward.1} parent=5 // pred_check
        %p427 = pneg %p426
      $region62: #{vae_forward.1} parent=5 // pred_check_branch
        %429 = sbr.rel (%p427) target = $region64
      $region63: #{vae_forward.1} parent=5 // pred_region
        // Predicated region
        $region65: #{vae_forward.1} parent=63 // pred_check
          %p430 = pneg %p43
        $region66: #{vae_forward.1} parent=63 // pred_check_branch
          %432 = sbr.rel (%p430) target = $region68
        $region67: #{vae_forward.1} parent=63 // pred_region
          %s433 = smul.u32 2, %s23
          %p434 = scmp.lt.s32.totalorder %s433, 3
          %s435 = scalar_select %p434, %s433, 3
          %s436 = smul.addr %s435, 2
          %s437 = smul.addr %s436, 4
          %s438 = scalar_lea.vmem %s0, %s437
          %s439 = smul.u32 2, %s23
        $region68: #{vae_forward.1} parent=63 // pred_fallthru
          _
      $region64: #{vae_forward.1} parent=5 // pred_fallthru
        _
      %p440 = scmp.le.s32.totalorder 1, %s23
      %p441 = scmp.lt.s32.totalorder %s23, 3
      %p442 = pnand %p440, %p441
      %p443 = pneg %p442
      // Predicated region
      $region69: #{vae_forward.1} parent=5 // pred_check
        _
      $region70: #{vae_forward.1} parent=5 // pred_check_branch
        %445 = sbr.rel (%p442) target = $region72
      $region71: #{vae_forward.1} parent=5 // pred_region
        %s446 = ssub.s32 %s23, 1
        // Predicated region
        $region73: #{vae_forward.1} parent=71 // pred_check
          %p447 = pneg %p91
        $region74: #{vae_forward.1} parent=71 // pred_check_branch
          %449 = sbr.rel (%p447) target = $region76
        $region75: #{vae_forward.1} parent=71 // pred_region
          %450 = dma.done [#allocation3], 16
        $region76: #{vae_forward.1} parent=71 // pred_fallthru
          _
        // Predicated region
        $region77: #{vae_forward.1} parent=71 // pred_check
          %p451 = pneg %p133
        $region78: #{vae_forward.1} parent=71 // pred_check_branch
          %453 = sbr.rel (%p451) target = $region80
        $region79: #{vae_forward.1} parent=71 // pred_region
          %454 = dma.done [#allocation5], 16
        $region80: #{vae_forward.1} parent=71 // pred_fallthru
          _
        // Predicated region
        $region81: #{vae_forward.1} parent=71 // pred_check
          %p455 = pneg %p175
        $region82: #{vae_forward.1} parent=71 // pred_check_branch
          %457 = sbr.rel (%p455) target = $region84
        $region83: #{vae_forward.1} parent=71 // pred_region
          %458 = dma.done [#allocation5], 16
        $region84: #{vae_forward.1} parent=71 // pred_fallthru
          _
        // Predicated region
        $region85: #{vae_forward.1} parent=71 // pred_check
          %p459 = pneg %p217
        $region86: #{vae_forward.1} parent=71 // pred_check_branch
          %461 = sbr.rel (%p459) target = $region88
        $region87: #{vae_forward.1} parent=71 // pred_region
          %462 = dma.done [#allocation8], 16
        $region88: #{vae_forward.1} parent=71 // pred_fallthru
          _
        // Predicated region
        $region89: #{vae_forward.1} parent=71 // pred_check
          %p463 = pneg %p259
        $region90: #{vae_forward.1} parent=71 // pred_check_branch
          %465 = sbr.rel (%p463) target = $region92
        $region91: #{vae_forward.1} parent=71 // pred_region
          %466 = dma.done [#allocation8], 16
        $region92: #{vae_forward.1} parent=71 // pred_fallthru
          _
        // Predicated region
        $region93: #{vae_forward.1} parent=71 // pred_check
          %p467 = pneg %p301
        $region94: #{vae_forward.1} parent=71 // pred_check_branch
          %469 = sbr.rel (%p467) target = $region96
        $region95: #{vae_forward.1} parent=71 // pred_region
          %470 = dma.done [#allocation11], 32
        $region96: #{vae_forward.1} parent=71 // pred_fallthru
          _
        %s471 = smul.u32 2, %s28
        %p472 = scmp.lt.s32.totalorder %s471, 3
        %s473 = scalar_select %p472, %s471, 3
        %s474 = smul.addr %s473, 2
        %s475 = smul.addr %s474, 4
        %s476 = scalar_lea.vmem %s0, %s475
        %p477 = pneg %p49
        %p478 = pneg %p46
        %p479 = pneg %p70
        %p480 = pneg %p67
        %p481 = pneg %p91
        %p482 = pneg %p88
        %p483 = pneg %p112
        %p484 = pneg %p109
        %p485 = pneg %p133
        %p486 = pneg %p130
        %p487 = pneg %p154
        %p488 = pneg %p151
        %p489 = pneg %p175
        %p490 = pneg %p172
        %p491 = pneg %p196
        %p492 = pneg %p193
        %p493 = pneg %p217
        %p494 = pneg %p214
        %p495 = pneg %p238
        %p496 = pneg %p235
        %p497 = pneg %p259
        %p498 = pneg %p256
        %p499 = pneg %p280
        %p500 = pneg %p277
        %p501 = pneg %p301
        %p502 = pneg %p298
        %p503 = pneg %p327
        %p504 = pneg %p324
        %s505 = smul.u32 2, %s28
        %p506 = scmp.lt.s32.totalorder %s505, 3
        %s507 = scalar_select %p506, %s505, 3
        %s508 = smul.addr %s507, 2
        %s509 = smul.addr %s508, 8
        %s510 = scalar_lea.vmem %s13, %s509
        %s511 = smul.u32 2, %s28
        %p512 = scmp.lt.s32.totalorder %s511, 3
        %s513 = scalar_select %p512, %s511, 3
        %s514 = smul.addr %s513, 2
        %s515 = smul.addr %s514, 4
        %s516 = scalar_lea.vmem %s0, %s515
        %s517 = smul.u32 2, %s28
        %s518 = smul.u32 2, %s28
        %p519 = scmp.lt.s32.totalorder %s518, 3
        %s520 = scalar_select %p519, %s518, 3
        %s521 = smul.addr %s520, 2
        %s522 = smul.addr %s521, 8
        %s523 = scalar_lea.vmem %s13, %s522
        %s524 = smul.u32 2, %s28
        %v526 = vld [vmem:[%s516] sm:$0xff]
        %v527 = vld [vmem:[%s516 + $0x8] sm:$0xff]
        %v528 = vld [vmem:[%s516 + $0x4] sm:$0xf]
        %v529 = vld [vmem:[%s516 + $0xc] sm:$0xf]
        %v530 = vunpack.c.l.bf16 %v528
        %v531 = vunpack.c.l.bf16 %v529
        %v532 = vld [vmem:[%s1] sm:$0xf]
        %v533 = vld [vmem:[%s1 + $0x4] sm:$0xf]
        %v534 = vld [vmem:[%s1 + $0x8] sm:$0xf]
        %v535 = vld [vmem:[%s1 + $0xc] sm:$0xf]
        %v536 = vld [vmem:[%s1 + $0x10] sm:$0xf]
        %v537 = vld [vmem:[%s1 + $0x14] sm:$0xf]
        %v538 = vld [vmem:[%s1 + $0x18] sm:$0xf]
        %v539 = vld [vmem:[%s1 + $0x1c] sm:$0xf]
        %v540 = vld [vmem:[%s1 + $0x20] sm:$0xf]
        %v541 = vld [vmem:[%s1 + $0x24] sm:$0xf]
        %v542 = vld [vmem:[%s1 + $0x28] sm:$0xf]
        %v543 = vld [vmem:[%s1 + $0x2c] sm:$0xf]
        %v544 = vld [vmem:[%s1 + $0x30] sm:$0xf]
        %v545 = vld [vmem:[%s1 + $0x34] sm:$0xf]
        %v546 = vld [vmem:[%s1 + $0x38] sm:$0xf]
        %v547 = vld [vmem:[%s1 + $0x3c] sm:$0xf]
        %v548 = vld [vmem:[%s1 + $0x40] sm:$0xf]
        %v549 = vld [vmem:[%s1 + $0x44] sm:$0xf]
        %v550 = vld [vmem:[%s1 + $0x48] sm:$0xf]
        %v551 = vld [vmem:[%s1 + $0x4c] sm:$0xf]
        %v552 = vld [vmem:[%s1 + $0x50] sm:$0xf]
        %v553 = vld [vmem:[%s1 + $0x54] sm:$0xf]
        %v554 = vld [vmem:[%s1 + $0x58] sm:$0xf]
        %v555 = vld [vmem:[%s1 + $0x5c] sm:$0xf]
        %v556 = vld [vmem:[%s1 + $0x60] sm:$0xf]
        %v557 = vld [vmem:[%s1 + $0x64] sm:$0xf]
        %v558 = vld [vmem:[%s1 + $0x68] sm:$0xf]
        %v559 = vld [vmem:[%s1 + $0x6c] sm:$0xf]
        %v560 = vld [vmem:[%s1 + $0x70] sm:$0xf]
        %v561 = vld [vmem:[%s1 + $0x74] sm:$0xf]
        %v562 = vld [vmem:[%s1 + $0x78] sm:$0xf]
        %v563 = vld [vmem:[%s1 + $0x7c] sm:$0xf]
        %v564 = vld [vmem:[#allocation2] sm:$0x1]
        %v566 = vlaneseq
        %v567 = vshrl.u32 %v566, 7
        %v568 = vsub.s32 0, %v567
        %v569 = vrot.slane %v564, %v568
        %v573 = vunpack.c.l.b16 %v526
        %v574 = vunpack.c.h.b16 %v526
        %v575 = vunpack.c.l.b16 %v527
        %v576 = vunpack.c.h.b16 %v527
        %v577 = vpack.c.b16 %v575, %v573
        %v578 = vpack.c.b16 %v576, %v574
        %v613 = vunpack.c.l.b16 %v532
        %v614 = vunpack.c.l.b16 %v533
        %v615 = vunpack.c.l.b16 %v534
        %v616 = vunpack.c.l.b16 %v535
        %v617 = vunpack.c.l.b16 %v536
        %v618 = vunpack.c.l.b16 %v537
        %v619 = vunpack.c.l.b16 %v538
        %v620 = vunpack.c.l.b16 %v539
        %v621 = vunpack.c.l.b16 %v540
        %v622 = vunpack.c.l.b16 %v541
        %v623 = vunpack.c.l.b16 %v542
        %v624 = vunpack.c.l.b16 %v543
        %v625 = vunpack.c.l.b16 %v544
        %v626 = vunpack.c.l.b16 %v545
        %v627 = vunpack.c.l.b16 %v546
        %v628 = vunpack.c.l.b16 %v547
        %v629 = vunpack.c.l.b16 %v548
        %v630 = vunpack.c.l.b16 %v549
        %v631 = vunpack.c.l.b16 %v550
        %v632 = vunpack.c.l.b16 %v551
        %v633 = vunpack.c.l.b16 %v552
        %v634 = vunpack.c.l.b16 %v553
        %v635 = vunpack.c.l.b16 %v554
        %v636 = vunpack.c.l.b16 %v555
        %v637 = vunpack.c.l.b16 %v556
        %v638 = vunpack.c.l.b16 %v557
        %v639 = vunpack.c.l.b16 %v558
        %v640 = vunpack.c.l.b16 %v559
        %v641 = vunpack.c.l.b16 %v560
        %v642 = vunpack.c.l.b16 %v561
        %v643 = vunpack.c.l.b16 %v562
        %v644 = vunpack.c.l.b16 %v563
        %v645 = vpack.c.b16 %v614, %v613
        %v646 = vpack.c.b16 %v616, %v615
        %v647 = vpack.c.b16 %v618, %v617
        %v648 = vpack.c.b16 %v620, %v619
        %v649 = vpack.c.b16 %v622, %v621
        %v650 = vpack.c.b16 %v624, %v623
        %v651 = vpack.c.b16 %v626, %v625
        %v652 = vpack.c.b16 %v628, %v627
        %v653 = vpack.c.b16 %v630, %v629
        %v654 = vpack.c.b16 %v632, %v631
        %v655 = vpack.c.b16 %v634, %v633
        %v656 = vpack.c.b16 %v636, %v635
        %v657 = vpack.c.b16 %v638, %v637
        %v658 = vpack.c.b16 %v640, %v639
        %v659 = vpack.c.b16 %v642, %v641
        %v660 = vpack.c.b16 %v644, %v643
        %677 = vmatprep.subr.bf16.mxu0 0
        %678 = vmatpush1.bf16.msra.mxu0 %v645
        %679 = vmatprep.subr.bf16.mxu0 0
        %680 = vmatpush1.bf16.msra.mxu0 %v646
        %681 = vmatprep.subr.bf16.mxu0 0
        %682 = vmatpush1.bf16.msra.mxu0 %v647
        %683 = vmatprep.subr.bf16.mxu0 0
        %684 = vmatpush1.bf16.msra.mxu0 %v648
        %685 = vmatprep.subr.bf16.mxu0 0
        %686 = vmatpush1.bf16.msra.mxu0 %v649
        %687 = vmatprep.subr.bf16.mxu0 0
        %688 = vmatpush1.bf16.msra.mxu0 %v650
        %689 = vmatprep.subr.bf16.mxu0 0
        %690 = vmatpush1.bf16.msra.mxu0 %v651
        %691 = vmatprep.subr.bf16.mxu0 0
        %692 = vmatpush1.bf16.msra.mxu0 %v652
        %693 = vmatprep.subr.bf16.mxu0 0
        %694 = vmatpush1.bf16.msra.mxu0 %v653
        %695 = vmatprep.subr.bf16.mxu0 0
        %696 = vmatpush1.bf16.msra.mxu0 %v654
        %697 = vmatprep.subr.bf16.mxu0 0
        %698 = vmatpush1.bf16.msra.mxu0 %v655
        %699 = vmatprep.subr.bf16.mxu0 0
        %700 = vmatpush1.bf16.msra.mxu0 %v656
        %701 = vmatprep.subr.bf16.mxu0 0
        %702 = vmatpush1.bf16.msra.mxu0 %v657
        %703 = vmatprep.subr.bf16.mxu0 0
        %704 = vmatpush1.bf16.msra.mxu0 %v658
        %705 = vmatprep.subr.bf16.mxu0 0
        %706 = vmatpush1.bf16.msra.mxu0 %v659
        %707 = vmatprep.subr.bf16.mxu0 0
        %708 = vmatpush1.bf16.msra.mxu0 %v660
        %709 = vmatprep.mubr.bf16.mxu0 %v578
        %710 = vmatmul.mubr.bf16.gmra.mrb[0].mxu0 %v577
        %v711 = vpop.f32.mrb[0].mxu0
        %v712 = vadd.f32 %v569, %v711
        %v713 = vpop.f32.mrb[0].mxu0
        %v714 = vpop.f32.mrb[0].mxu0
        %v715 = vadd.f32 %v569, %v714
        %v716 = vpop.f32.mrb[0].mxu0
        %717 = vdwg.mxu0
        %v718 = vmax.f32 %v712, 0.0
        %v719 = vmax.f32 %v715, 0.0
        %v720 = vpack.c.bf16 %v719, %v718
        %v721 = vld [vmem:[%s3] sm:$0xf]
        %v722 = vld [vmem:[%s3 + $0x4] sm:$0xf]
        %v723 = vld [vmem:[%s3 + $0x8] sm:$0xf]
        %v724 = vld [vmem:[%s3 + $0xc] sm:$0xf]
        %v725 = vld [vmem:[%s3 + $0x10] sm:$0xf]
        %v726 = vld [vmem:[%s3 + $0x14] sm:$0xf]
        %v727 = vld [vmem:[%s3 + $0x18] sm:$0xf]
        %v728 = vld [vmem:[%s3 + $0x1c] sm:$0xf]
        %v729 = vld [vmem:[%s3 + $0x20] sm:$0xf]
        %v730 = vld [vmem:[%s3 + $0x24] sm:$0xf]
        %v731 = vld [vmem:[%s3 + $0x28] sm:$0xf]
        %v732 = vld [vmem:[%s3 + $0x2c] sm:$0xf]
        %v733 = vld [vmem:[%s3 + $0x30] sm:$0xf]
        %v734 = vld [vmem:[%s3 + $0x34] sm:$0xf]
        %v735 = vld [vmem:[%s3 + $0x38] sm:$0xf]
        %v736 = vld [vmem:[%s3 + $0x3c] sm:$0xf]
        %v737 = vld [vmem:[#allocation4] sm:$0x1]
        %v739 = vlaneseq
        %v740 = vshrl.u32 %v739, 7
        %v741 = vsub.s32 0, %v740
        %v742 = vrot.slane %v737, %v741
        %v760 = vunpack.c.l.b16 %v721
        %v761 = vunpack.c.l.b16 %v722
        %v762 = vunpack.c.l.b16 %v723
        %v763 = vunpack.c.l.b16 %v724
        %v764 = vunpack.c.l.b16 %v725
        %v765 = vunpack.c.l.b16 %v726
        %v766 = vunpack.c.l.b16 %v727
        %v767 = vunpack.c.l.b16 %v728
        %v768 = vunpack.c.l.b16 %v729
        %v769 = vunpack.c.l.b16 %v730
        %v770 = vunpack.c.l.b16 %v731
        %v771 = vunpack.c.l.b16 %v732
        %v772 = vunpack.c.l.b16 %v733
        %v773 = vunpack.c.l.b16 %v734
        %v774 = vunpack.c.l.b16 %v735
        %v775 = vunpack.c.l.b16 %v736
        %v776 = vpack.c.b16 %v761, %v760
        %v777 = vpack.c.b16 %v763, %v762
        %v778 = vpack.c.b16 %v765, %v764
        %v779 = vpack.c.b16 %v767, %v766
        %v780 = vpack.c.b16 %v769, %v768
        %v781 = vpack.c.b16 %v771, %v770
        %v782 = vpack.c.b16 %v773, %v772
        %v783 = vpack.c.b16 %v775, %v774
        %792 = vmatprep.subr.bf16.mxu0 0
        %793 = vmatpush1.bf16.msra.mxu0 %v776
        %794 = vmatprep.subr.bf16.mxu0 0
        %795 = vmatpush1.bf16.msra.mxu0 %v777
        %796 = vmatprep.subr.bf16.mxu0 0
        %797 = vmatpush1.bf16.msra.mxu0 %v778
        %798 = vmatprep.subr.bf16.mxu0 0
        %799 = vmatpush1.bf16.msra.mxu0 %v779
        %800 = vmatprep.subr.bf16.mxu0 0
        %801 = vmatpush1.bf16.msra.mxu0 %v780
        %802 = vmatprep.subr.bf16.mxu0 0
        %803 = vmatpush1.bf16.msra.mxu0 %v781
        %804 = vmatprep.subr.bf16.mxu0 0
        %805 = vmatpush1.bf16.msra.mxu0 %v782
        %806 = vmatprep.subr.bf16.mxu0 0
        %807 = vmatpush1.bf16.msra.mxu0 %v783
        %808 = vmatprep.subr.bf16.mxu0 0
        %809 = vmatpush1.bf16.msra.mxu0 0
        %810 = vmatprep.subr.bf16.mxu0 0
        %811 = vmatpush1.bf16.msra.mxu0 0
        %812 = vmatprep.subr.bf16.mxu0 0
        %813 = vmatpush1.bf16.msra.mxu0 0
        %814 = vmatprep.subr.bf16.mxu0 0
        %815 = vmatpush1.bf16.msra.mxu0 0
        %816 = vmatprep.subr.bf16.mxu0 0
        %817 = vmatpush1.bf16.msra.mxu0 0
        %818 = vmatprep.subr.bf16.mxu0 0
        %819 = vmatpush1.bf16.msra.mxu0 0
        %820 = vmatprep.subr.bf16.mxu0 0
        %821 = vmatpush1.bf16.msra.mxu0 0
        %822 = vmatprep.subr.bf16.mxu0 0
        %823 = vmatpush1.bf16.msra.mxu0 0
        %824 = vmatprep.mubr.bf16.mxu0 0
        %825 = vmatmul.mubr.bf16.gmra.mrb[0].mxu0 %v720
        %v826 = vpop.f32.mrb[0].mxu0
        %v827 = vadd.f32 %v742, %v826
        %v828 = vpop.f32.mrb[0].mxu0
        %v829 = vpop.f32.mrb[0].mxu0
        %v830 = vadd.f32 %v742, %v829
        %v831 = vpop.f32.mrb[0].mxu0
        %832 = vdwg.mxu0
        %v833 = vmax.f32 %v827, 0.0
        %v834 = vmax.f32 %v830, 0.0
        %v835 = vpack.c.bf16 %v834, %v833
        %v836 = vld [vmem:[%s5] sm:$0xf]
        %v837 = vld [vmem:[%s5 + $0x4] sm:$0xf]
        %v838 = vld [vmem:[%s5 + $0x8] sm:$0xf]
        %v839 = vld [vmem:[%s5 + $0xc] sm:$0xf]
        %v840 = vld [vmem:[%s5 + $0x10] sm:$0xf]
        %v841 = vld [vmem:[%s5 + $0x14] sm:$0xf]
        %v842 = vld [vmem:[%s5 + $0x18] sm:$0xf]
        %v843 = vld [vmem:[%s5 + $0x1c] sm:$0xf]
        %v844 = vld [vmem:[#allocation6] sm:$0x1]
        %v846 = vlaneseq
        %v847 = vshrl.u32 %v846, 7
        %v848 = vsub.s32 0, %v847
        %v849 = vrot.slane %v844, %v848
        %v859 = vunpack.c.l.b16 %v836
        %v860 = vunpack.c.l.b16 %v837
        %v861 = vunpack.c.l.b16 %v838
        %v862 = vunpack.c.l.b16 %v839
        %v863 = vunpack.c.l.b16 %v840
        %v864 = vunpack.c.l.b16 %v841
        %v865 = vunpack.c.l.b16 %v842
        %v866 = vunpack.c.l.b16 %v843
        %v867 = vpack.c.b16 %v860, %v859
        %v868 = vpack.c.b16 %v862, %v861
        %v869 = vpack.c.b16 %v864, %v863
        %v870 = vpack.c.b16 %v866, %v865
        %vm875 = vcmask 523264
        %v877 = vsel %vm875, %v835, 0
        %879 = vmatprep.subr.bf16.mxu0 0
        %880 = vmatpush1.bf16.msra.mxu0 %v867
        %881 = vmatprep.subr.bf16.mxu0 0
        %882 = vmatpush1.bf16.msra.mxu0 %v868
        %883 = vmatprep.subr.bf16.mxu0 0
        %884 = vmatpush1.bf16.msra.mxu0 %v869
        %885 = vmatprep.subr.bf16.mxu0 0
        %886 = vmatpush1.bf16.msra.mxu0 %v870
        %887 = vmatprep.subr.bf16.mxu0 0
        %888 = vmatpush1.bf16.msra.mxu0 0
        %889 = vmatprep.subr.bf16.mxu0 0
        %890 = vmatpush1.bf16.msra.mxu0 0
        %891 = vmatprep.subr.bf16.mxu0 0
        %892 = vmatpush1.bf16.msra.mxu0 0
        %893 = vmatprep.subr.bf16.mxu0 0
        %894 = vmatpush1.bf16.msra.mxu0 0
        %895 = vmatprep.subr.bf16.mxu0 0
        %896 = vmatpush1.bf16.msra.mxu0 0
        %897 = vmatprep.subr.bf16.mxu0 0
        %898 = vmatpush1.bf16.msra.mxu0 0
        %899 = vmatprep.subr.bf16.mxu0 0
        %900 = vmatpush1.bf16.msra.mxu0 0
        %901 = vmatprep.subr.bf16.mxu0 0
        %902 = vmatpush1.bf16.msra.mxu0 0
        %903 = vmatprep.subr.bf16.mxu0 0
        %904 = vmatpush1.bf16.msra.mxu0 0
        %905 = vmatprep.subr.bf16.mxu0 0
        %906 = vmatpush1.bf16.msra.mxu0 0
        %907 = vmatprep.subr.bf16.mxu0 0
        %908 = vmatpush1.bf16.msra.mxu0 0
        %909 = vmatprep.subr.bf16.mxu0 0
        %910 = vmatpush1.bf16.msra.mxu0 0
        %911 = vmatprep.mubr.bf16.mxu0 0
        %912 = vmatmul.mubr.bf16.gmra.mrb[0].mxu0 %v877
        %v913 = vpop.f32.mrb[0].mxu0
        %v914 = vadd.f32 %v849, %v913
        %v915 = vpop.f32.mrb[0].mxu0
        %v916 = vpop.f32.mrb[0].mxu0
        %v917 = vadd.f32 %v849, %v916
        %v918 = vpop.f32.mrb[0].mxu0
        %919 = vdwg.mxu0
        %v920 = vmul.f32 %v914, 0.5
        %v921 = vmul.f32 %v917, 0.5
        %v922 = vmul.f32 %v920, 1.442695
        %v923 = vpow.pop %v922
        %v924 = vmul.f32 %v921, 1.442695
        %v925 = vpow.pop %v924
        %928 = vrot.lane.b32.xlu0 %v923, 70
        %v929 = vpop.permute.xlu0 %928
        %930 = vrot.lane.b32.xlu0 %v925, 70
        %v931 = vpop.permute.xlu0 %930
        %v934 = vmul.f32 %v530, %v929
        %v935 = vmul.f32 %v531, %v931
        %938 = vrot.lane.b32.xlu0 %v934, 56
        %v939 = vpop.permute.xlu0 %938
        %940 = vrot.lane.b32.xlu0 %v935, 56
        %v941 = vpop.permute.xlu0 %940
        %v944 = vadd.f32 %v914, %v939
        %v945 = vadd.f32 %v917, %v941
        %v946 = vld [vmem:[#allocation7] sm:$0x1]
        %v947 = vld [vmem:[%s7] sm:$0x1]
        %949 = vset.pattern.permute.xlu0 0
        %950 = vperm.xlu0 %949, %v944
        %v951 = vpop.permute.xlu0 %950
        %954 = vset.pattern.permute.xlu0 0
        %955 = vperm.xlu0 %954, %v945
        %v956 = vpop.permute.xlu0 %955
        %v958 = vlaneseq
        %v959 = vshrl.u32 %v958, 7
        %v960 = vsub.s32 0, %v959
        %v961 = vrot.slane %v947, %v960
        %v962 = vmul.f32 %v951, %v961
        %v963 = vmul.f32 %v956, %v961
        %v965 = vlaneseq
        %v966 = vshrl.u32 %v965, 7
        %v967 = vsub.s32 0, %v966
        %v968 = vrot.slane %v946, %v967
        %v970 = vadd.f32 %v968, %v962
        %v971 = vadd.f32 %v968, %v963
        %v972 = vld [vmem:[%s7 + $0x1] sm:$0x1]
        %973 = vset.pattern.permute.xlu0 1
        %974 = vperm.xlu0 %973, %v944
        %v975 = vpop.permute.xlu0 %974
        %977 = vset.pattern.permute.xlu0 1
        %978 = vperm.xlu0 %977, %v945
        %v979 = vpop.permute.xlu0 %978
        %v981 = vlaneseq
        %v982 = vshrl.u32 %v981, 7
        %v983 = vsub.s32 0, %v982
        %v984 = vrot.slane %v972, %v983
        %v985 = vmul.f32 %v975, %v984
        %v986 = vmul.f32 %v979, %v984
        %v987 = vadd.f32 %v970, %v985
        %v988 = vadd.f32 %v971, %v986
        %v989 = vmax.f32 %v987, 0.0
        %v990 = vmax.f32 %v988, 0.0
        %v991 = vpack.c.bf16 %v990, %v989
        %v992 = vld [vmem:[%s9] sm:$0xf]
        %v993 = vld [vmem:[%s9 + $0x4] sm:$0xf]
        %v994 = vld [vmem:[%s9 + $0x8] sm:$0xf]
        %v995 = vld [vmem:[%s9 + $0xc] sm:$0xf]
        %v996 = vld [vmem:[%s9 + $0x10] sm:$0xf]
        %v997 = vld [vmem:[%s9 + $0x14] sm:$0xf]
        %v998 = vld [vmem:[%s9 + $0x18] sm:$0xf]
        %v999 = vld [vmem:[%s9 + $0x1c] sm:$0xf]
        %v1000 = vld [vmem:[#allocation9] sm:$0x1]
        %v1002 = vlaneseq
        %v1003 = vshrl.u32 %v1002, 7
        %v1004 = vsub.s32 0, %v1003
        %v1005 = vrot.slane %v1000, %v1004
        %v1015 = vunpack.c.l.b16 %v992
        %v1016 = vunpack.c.l.b16 %v993
        %v1017 = vunpack.c.l.b16 %v994
        %v1018 = vunpack.c.l.b16 %v995
        %v1019 = vunpack.c.l.b16 %v996
        %v1020 = vunpack.c.l.b16 %v997
        %v1021 = vunpack.c.l.b16 %v998
        %v1022 = vunpack.c.l.b16 %v999
        %v1023 = vpack.c.b16 %v1016, %v1015
        %v1024 = vpack.c.b16 %v1018, %v1017
        %v1025 = vpack.c.b16 %v1020, %v1019
        %v1026 = vpack.c.b16 %v1022, %v1021
        %v1032 = vsel %vm875, %v991, 0
        %1034 = vmatprep.subr.bf16.mxu0 0
        %1035 = vmatpush1.bf16.msra.mxu0 %v1023
        %1036 = vmatprep.subr.bf16.mxu0 0
        %1037 = vmatpush1.bf16.msra.mxu0 %v1024
        %1038 = vmatprep.subr.bf16.mxu0 0
        %1039 = vmatpush1.bf16.msra.mxu0 %v1025
        %1040 = vmatprep.subr.bf16.mxu0 0
        %1041 = vmatpush1.bf16.msra.mxu0 %v1026
        %1042 = vmatprep.subr.bf16.mxu0 0
        %1043 = vmatpush1.bf16.msra.mxu0 0
        %1044 = vmatprep.subr.bf16.mxu0 0
        %1045 = vmatpush1.bf16.msra.mxu0 0
        %1046 = vmatprep.subr.bf16.mxu0 0
        %1047 = vmatpush1.bf16.msra.mxu0 0
        %1048 = vmatprep.subr.bf16.mxu0 0
        %1049 = vmatpush1.bf16.msra.mxu0 0
        %1050 = vmatprep.subr.bf16.mxu0 0
        %1051 = vmatpush1.bf16.msra.mxu0 0
        %1052 = vmatprep.subr.bf16.mxu0 0
        %1053 = vmatpush1.bf16.msra.mxu0 0
        %1054 = vmatprep.subr.bf16.mxu0 0
        %1055 = vmatpush1.bf16.msra.mxu0 0
        %1056 = vmatprep.subr.bf16.mxu0 0
        %1057 = vmatpush1.bf16.msra.mxu0 0
        %1058 = vmatprep.subr.bf16.mxu0 0
        %1059 = vmatpush1.bf16.msra.mxu0 0
        %1060 = vmatprep.subr.bf16.mxu0 0
        %1061 = vmatpush1.bf16.msra.mxu0 0
        %1062 = vmatprep.subr.bf16.mxu0 0
        %1063 = vmatpush1.bf16.msra.mxu0 0
        %1064 = vmatprep.subr.bf16.mxu0 0
        %1065 = vmatpush1.bf16.msra.mxu0 0
        %1066 = vmatprep.mubr.bf16.mxu0 0
        %1067 = vmatmul.mubr.bf16.gmra.mrb[0].mxu0 %v1032
        %v1068 = vpop.f32.mrb[0].mxu0
        %v1069 = vadd.f32 %v1005, %v1068
        %v1070 = vpop.f32.mrb[0].mxu0
        %v1071 = vpop.f32.mrb[0].mxu0
        %v1072 = vadd.f32 %v1005, %v1071
        %v1073 = vpop.f32.mrb[0].mxu0
        %1074 = vdwg.mxu0
        %v1075 = vmax.f32 %v1069, 0.0
        %v1076 = vmax.f32 %v1072, 0.0
        %v1077 = vpack.c.bf16 %v1076, %v1075
        %v1078 = vld [vmem:[%s11] sm:$0xff]
        %v1079 = vld [vmem:[%s11 + $0x8] sm:$0xff]
        %v1080 = vld [vmem:[%s11 + $0x10] sm:$0xff]
        %v1081 = vld [vmem:[%s11 + $0x18] sm:$0xff]
        %v1082 = vld [vmem:[%s11 + $0x20] sm:$0xff]
        %v1083 = vld [vmem:[%s11 + $0x28] sm:$0xff]
        %v1084 = vld [vmem:[%s11 + $0x30] sm:$0xff]
        %v1085 = vld [vmem:[%s11 + $0x38] sm:$0xff]
        %v1086 = vld [vmem:[%s11 + $0x40] sm:$0xff]
        %v1087 = vld [vmem:[%s11 + $0x48] sm:$0xff]
        %v1088 = vld [vmem:[%s11 + $0x50] sm:$0xff]
        %v1089 = vld [vmem:[%s11 + $0x58] sm:$0xff]
        %v1090 = vld [vmem:[%s11 + $0x60] sm:$0xff]
        %v1091 = vld [vmem:[%s11 + $0x68] sm:$0xff]
        %v1092 = vld [vmem:[%s11 + $0x70] sm:$0xff]
        %v1093 = vld [vmem:[%s11 + $0x78] sm:$0xff]
        %v1094 = vld [vmem:[#allocation10] sm:$0x3]
        %v1096 = vlaneseq
        %v1097 = vshrl.u32 %v1096, 7
        %v1098 = vsub.s32 0, %v1097
        %v1099 = vrot.slane %v1094, %v1098
        %v1100 = vlaneseq
        %v1101 = vshrl.u32 %v1100, 7
        %v1102 = vsub.s32 1, %v1101
        %v1103 = vrot.slane %v1094, %v1102
        %v1122 = vunpack.c.l.b16 %v1078
        %v1123 = vunpack.c.h.b16 %v1078
        %v1124 = vunpack.c.l.b16 %v1079
        %v1125 = vunpack.c.h.b16 %v1079
        %v1126 = vunpack.c.l.b16 %v1080
        %v1127 = vunpack.c.h.b16 %v1080
        %v1128 = vunpack.c.l.b16 %v1081
        %v1129 = vunpack.c.h.b16 %v1081
        %v1130 = vunpack.c.l.b16 %v1082
        %v1131 = vunpack.c.h.b16 %v1082
        %v1132 = vunpack.c.l.b16 %v1083
        %v1133 = vunpack.c.h.b16 %v1083
        %v1134 = vunpack.c.l.b16 %v1084
        %v1135 = vunpack.c.h.b16 %v1084
        %v1136 = vunpack.c.l.b16 %v1085
        %v1137 = vunpack.c.h.b16 %v1085
        %v1138 = vunpack.c.l.b16 %v1086
        %v1139 = vunpack.c.h.b16 %v1086
        %v1140 = vunpack.c.l.b16 %v1087
        %v1141 = vunpack.c.h.b16 %v1087
        %v1142 = vunpack.c.l.b16 %v1088
        %v1143 = vunpack.c.h.b16 %v1088
        %v1144 = vunpack.c.l.b16 %v1089
        %v1145 = vunpack.c.h.b16 %v1089
        %v1146 = vunpack.c.l.b16 %v1090
        %v1147 = vunpack.c.h.b16 %v1090
        %v1148 = vunpack.c.l.b16 %v1091
        %v1149 = vunpack.c.h.b16 %v1091
        %v1150 = vunpack.c.l.b16 %v1092
        %v1151 = vunpack.c.h.b16 %v1092
        %v1152 = vunpack.c.l.b16 %v1093
        %v1153 = vunpack.c.h.b16 %v1093
        %v1154 = vpack.c.b16 %v1124, %v1122
        %v1155 = vpack.c.b16 %v1125, %v1123
        %v1156 = vpack.c.b16 %v1128, %v1126
        %v1157 = vpack.c.b16 %v1129, %v1127
        %v1158 = vpack.c.b16 %v1132, %v1130
        %v1159 = vpack.c.b16 %v1133, %v1131
        %v1160 = vpack.c.b16 %v1136, %v1134
        %v1161 = vpack.c.b16 %v1137, %v1135
        %v1162 = vpack.c.b16 %v1140, %v1138
        %v1163 = vpack.c.b16 %v1141, %v1139
        %v1164 = vpack.c.b16 %v1144, %v1142
        %v1165 = vpack.c.b16 %v1145, %v1143
        %v1166 = vpack.c.b16 %v1148, %v1146
        %v1167 = vpack.c.b16 %v1149, %v1147
        %v1168 = vpack.c.b16 %v1152, %v1150
        %v1169 = vpack.c.b16 %v1153, %v1151
        %1186 = vmatprep.subr.bf16.mxu0 %v1155
        %1187 = vmatpush1.bf16.msra.mxu0 %v1154
        %1188 = vmatprep.subr.bf16.mxu0 %v1157
        %1189 = vmatpush1.bf16.msra.mxu0 %v1156
        %1190 = vmatprep.subr.bf16.mxu0 %v1159
        %1191 = vmatpush1.bf16.msra.mxu0 %v1158
        %1192 = vmatprep.subr.bf16.mxu0 %v1161
        %1193 = vmatpush1.bf16.msra.mxu0 %v1160
        %1194 = vmatprep.subr.bf16.mxu0 %v1163
        %1195 = vmatpush1.bf16.msra.mxu0 %v1162
        %1196 = vmatprep.subr.bf16.mxu0 %v1165
        %1197 = vmatpush1.bf16.msra.mxu0 %v1164
        %1198 = vmatprep.subr.bf16.mxu0 %v1167
        %1199 = vmatpush1.bf16.msra.mxu0 %v1166
        %1200 = vmatprep.subr.bf16.mxu0 %v1169
        %1201 = vmatpush1.bf16.msra.mxu0 %v1168
        %1202 = vmatprep.subr.bf16.mxu0 0
        %1203 = vmatpush1.bf16.msra.mxu0 0
        %1204 = vmatprep.subr.bf16.mxu0 0
        %1205 = vmatpush1.bf16.msra.mxu0 0
        %1206 = vmatprep.subr.bf16.mxu0 0
        %1207 = vmatpush1.bf16.msra.mxu0 0
        %1208 = vmatprep.subr.bf16.mxu0 0
        %1209 = vmatpush1.bf16.msra.mxu0 0
        %1210 = vmatprep.subr.bf16.mxu0 0
        %1211 = vmatpush1.bf16.msra.mxu0 0
        %1212 = vmatprep.subr.bf16.mxu0 0
        %1213 = vmatpush1.bf16.msra.mxu0 0
        %1214 = vmatprep.subr.bf16.mxu0 0
        %1215 = vmatpush1.bf16.msra.mxu0 0
        %1216 = vmatprep.subr.bf16.mxu0 0
        %1217 = vmatpush1.bf16.msra.mxu0 0
        %1218 = vmatprep.mubr.bf16.mxu0 0
        %1219 = vmatmul.mubr.bf16.gmra.mrb[0].mxu0 %v1077
        %v1220 = vpop.f32.mrb[0].mxu0
        %v1221 = vadd.f32 %v1099, %v1220
        %v1222 = vpop.f32.mrb[0].mxu0
        %v1223 = vadd.f32 %v1103, %v1222
        %v1224 = vpop.f32.mrb[0].mxu0
        %v1225 = vadd.f32 %v1099, %v1224
        %v1226 = vpop.f32.mrb[0].mxu0
        %v1227 = vadd.f32 %v1103, %v1226
        %1228 = vdwg.mxu0
        %v1229 = vxor.u32 %v1221, 2147483648
        %v1230 = vxor.u32 %v1223, 2147483648
        %v1231 = vxor.u32 %v1225, 2147483648
        %v1232 = vxor.u32 %v1227, 2147483648
        %v1233 = vmul.f32 %v1229, 1.442695
        %v1234 = vpow.pop %v1233
        %v1235 = vmul.f32 %v1230, 1.442695
        %v1236 = vpow.pop %v1235
        %v1237 = vmul.f32 %v1231, 1.442695
        %v1238 = vpow.pop %v1237
        %v1239 = vmul.f32 %v1232, 1.442695
        %v1240 = vpow.pop %v1239
        %v1241 = vadd.f32 %v1234, 1.0
        %v1242 = vadd.f32 %v1236, 1.0
        %v1243 = vadd.f32 %v1238, 1.0
        %v1244 = vadd.f32 %v1240, 1.0
        %v1245 = vrcp.pop %v1241
        %v1246 = vmul.f32 1.0, %v1245
        %v1247 = vrcp.pop %v1242
        %v1248 = vmul.f32 1.0, %v1247
        %v1249 = vrcp.pop %v1243
        %v1250 = vmul.f32 1.0, %v1249
        %v1251 = vrcp.pop %v1244
        %v1252 = vmul.f32 1.0, %v1251
        %1253 = vst [vmem:[%s523] sm:$0xff] %v1246
        %1254 = vst [vmem:[%s523 + $0x8] sm:$0xff] %v1248
        %1255 = vst [vmem:[%s523 + $0x10] sm:$0xff] %v1250
        %1256 = vst [vmem:[%s523 + $0x18] sm:$0xff] %v1252
        %1259 = vrot.lane.b32.xlu0 %v914, 72
        %v1260 = vpop.permute.xlu0 %1259
        %1261 = vrot.lane.b32.xlu0 %v917, 72
        %v1262 = vpop.permute.xlu0 %1261
        %vm1265 = vcmask 622144
        %1266 = vst.msk [vmem:[%s523 + $0x8] sm:$0xff] %vm1265, %v1260
        %1267 = vst.msk [vmem:[%s523 + $0x18] sm:$0xff] %vm1265, %v1262
        %s1268 = smul.u32 2, %s28
        %p1269 = scmp.lt.s32.totalorder %s1268, 3
        %s1270 = scalar_select %p1269, %s1268, 3
        %s1271 = smul.addr %s1270, 2
        %s1272 = smul.addr %s1271, 8
        %s1273 = scalar_lea.vmem %s13, %s1272
        // Predicated region
        $region97: #{vae_forward.1} parent=71 // pred_check
          %p1274 = pneg %p324
        $region98: #{vae_forward.1} parent=71 // pred_check_branch
          %1276 = sbr.rel (%p1274) target = $region100
        $region99: #{vae_forward.1} parent=71 // pred_region
          %s1277 = smul.u32 2, %s28
        $region100: #{vae_forward.1} parent=71 // pred_fallthru
          _
      $region72: #{vae_forward.1} parent=5 // pred_fallthru
        _
      %p1278 = scmp.le.s32.totalorder 2, %s23
      // Predicated region
      $region101: #{vae_forward.1} parent=5 // pred_check
        %p1279 = pneg %p1278
      $region102: #{vae_forward.1} parent=5 // pred_check_branch
        %1281 = sbr.rel (%p1279) target = $region104
      $region103: #{vae_forward.1} parent=5 // pred_region
        %s1282 = ssub.s32 %s23, 2
        // Predicated region
        $region105: #{vae_forward.1} parent=103 // pred_check
          %p1283 = pneg %p330
        $region106: #{vae_forward.1} parent=103 // pred_check_branch
          %1285 = sbr.rel (%p1283) target = $region108
        $region107: #{vae_forward.1} parent=103 // pred_region
          %s1286 = smul.u32 2, %s29
          %p1287 = scmp.lt.s32.totalorder %s1286, 3
          %s1288 = scalar_select %p1287, %s1286, 3
          %s1289 = smul.addr %s1288, 2
          %s1290 = smul.addr %s1289, 8
          %s1291 = scalar_lea.vmem %s13, %s1290
        $region108: #{vae_forward.1} parent=103 // pred_fallthru
          _
      $region104: #{vae_forward.1} parent=5 // pred_fallthru
        _
    $region6: #{vae_forward.1} parent=1 // loop_footer
      %s27 = sadd.s32 1, %s23
    $region7: #{vae_forward.1} parent=1 // loop_footer_branch
      %22 = sbr.rel target = $region3
    $region8: #{vae_forward.1} parent=1 // loop_exit
      _
    %1292 = vsyncpa [#allocation3], 1
    %s1293 = scalar_lea.sflag [#allocation3], 1
    %1294 = vsyncpa %s1293, 1
    %1295 = vsyncpa [#allocation5], 1
    %1296 = vsyncpa [#allocation8], 1
    %1297 = vsyncpa [#allocation11], 1

</llo_original>
